<compile_context>
chip_gen: v7x
topology: tpu7x:2x2x1
jax: 0.10.0
libtpu: 0.0.40
codegen_flags: <defaults>
</compile_context>

<pallas_src>
import jax
import jax.numpy as jnp
from jax.experimental import pallas as pl
from jax.experimental.pallas import tpu as pltpu


_LANES = 128  # TPU lane width (last dim)


def _round_up(x, m):
    return -(-x // m) * m


def _sublanes_for(dtype):
    # Packed-sublane granularity: f32 -> 8, bf16/f16 -> 16, int8/fp8 -> 32.
    return (8 * 4) // jnp.dtype(dtype).itemsize


def _feature_selector_kernel(z_ref, x_ref, o_ref):
    # hard_sigmoid(z) = clamp(z + 0.5, 0, 1), then broadcast multiply over the rows.
    gate = jnp.clip(z_ref[...] + 0.5, 0.0, 1.0)           # (1, TD)
    o_ref[...] = (x_ref[...] * gate).astype(o_ref.dtype)  # (TB, TD) * (1, TD) -> (TB, TD)


def _gated_multiply_2d(x, z):
    """out[r, c] = x[r, c] * clip(z[c] + 0.5, 0, 1). No wrapper-side pad/slice."""
    rows, d = x.shape
    dtype = x.dtype
    itemsize = jnp.dtype(dtype).itemsize
    sub = _sublanes_for(dtype)

    # Feature (lane) tile: multiple of 128, capped at 1024 lanes. Ragged edge blocks are
    # handled by Pallas with partial DMA copies / masked stores, so no padding is needed.
    TD = min(_round_up(d, _LANES), 1024)

    # Row (sublane) tile: keep the double-buffered footprint (2x in tiles + 2x out tiles)
    # under ~20 MiB, which fits comfortably under the explicit 32 MiB VMEM limit below on
    # every generation (v5e/v6e: 128 MiB physical, v7x: 64 MiB physical).
    vmem_budget = 20 * 1024 * 1024
    max_tb = max(sub, (vmem_budget // (4 * TD * itemsize)) // sub * sub)
    TB = min(1024, max_tb, _round_up(rows, sub))

    # Feature-outer, batch-inner: gate block index depends only on the outer axis, so the
    # (tiny) gate DMA is not re-issued on every inner grid step. Both axes are "parallel"
    # so the megacore (v7x) can shard whichever axis has >= 2 tiles.
    grid = (pl.cdiv(d, TD), pl.cdiv(rows, TB))

    z2d = z.reshape(1, d)

    return pl.pallas_call(
        _feature_selector_kernel,
        out_shape=jax.ShapeDtypeStruct((rows, d), dtype),
        grid=grid,
        in_specs=[
            pl.BlockSpec((1, TD), lambda dj, bi: (0, dj)),    # gate row (invariant over inner loop)
            pl.BlockSpec((TB, TD), lambda dj, bi: (bi, dj)),  # x tile
        ],
        out_specs=pl.BlockSpec((TB, TD), lambda dj, bi: (bi, dj)),
        compiler_params=pltpu.CompilerParams(
            dimension_semantics=("parallel", "parallel"),
            vmem_limit_bytes=32 * 1024 * 1024,
        ),
        # TODO(synk): if prev_x is dead after this op, add input_output_aliases={1: 0} and
        # donate prev_x at the jit boundary (shapes now match 1:1, so aliasing is valid).
    )(z2d, x)


def _gated_multiply(prev_x, z):
    """out = prev_x * clip(z + 0.5, 0, 1), broadcast over all leading axes of prev_x."""
    d = prev_x.shape[-1]
    x2 = prev_x.reshape(-1, d)
    batch = x2.shape[0]

    # Small feature dims that divide the lane width: free row-major re-view to a lane-dense
    # (rows, 128) slab + tiny tiled gate row. 128/d x less HBM traffic than lane-padding and
    # stores stay fully unmasked.
    if d < _LANES and _LANES % d == 0 and (batch * d) % _LANES == 0:
        reps = _LANES // d
        out = _gated_multiply_2d(x2.reshape((batch * d) // _LANES, _LANES),
                                 jnp.tile(z, reps))
        return out.reshape(prev_x.shape)

    out = _gated_multiply_2d(x2, z)
    return out.reshape(prev_x.shape)


def feature_selector_forward(prev_x, mu, *, sigma=3.0, training=False, key=None):
    """Pallas implementation of FeatureSelector.forward.

    prev_x: (..., input_dim) activations
    mu:     (input_dim,) parameter
    """
    input_dim = mu.shape[0]
    assert prev_x.shape[-1] == input_dim
    if training:
        # PyTorch draws fresh normals in-place each call; here the caller supplies a PRNG key.
        if key is None:
            key = jax.random.PRNGKey(0)
        k1, k2 = jax.random.split(key)
        noise = jax.random.normal(k1, (input_dim,), dtype=mu.dtype)          # self.noise.normal_()
        strong_noise = jax.random.normal(k2, (input_dim,), dtype=mu.dtype)   # strong_noise
        z = mu + sigma * noise + strong_noise                                # single fused expr
    else:
        z = mu
    return _gated_multiply(prev_x, z)


def feature_selector_reference(prev_x, mu, *, sigma=3.0, training=False, key=None):
    """Pure-JAX reference (mirrors the PyTorch forward)."""
    input_dim = mu.shape[0]
    if training:
        k1, k2 = jax.random.split(key if key is not None else jax.random.PRNGKey(0))
        noise = jax.random.normal(k1, (input_dim,), dtype=mu.dtype)
        strong_noise = jax.random.normal(k2, (input_dim,), dtype=mu.dtype)
        z = mu + sigma * noise + strong_noise
    else:
        z = mu
    gate = jnp.clip(z + 0.5, 0.0, 1.0)
    return prev_x * gate


if __name__ == "__main__":
    key = jax.random.PRNGKey(0)
    k_mu, k_x, k_noise, k_mu2, k_x2, k_x3 = jax.random.split(key, 6)

    sigma = 3.0

    # ---- module-consistent small shapes: batch=8, input_dim=32 (lane-dense reshape path) ----
    batch, input_dim = 8, 32
    mu = 0.01 * jax.random.normal(k_mu, (input_dim,), dtype=jnp.float32)
    prev_x = jax.random.normal(k_x, (batch, input_dim), dtype=jnp.float32)

    out_eval = feature_selector_forward(prev_x, mu, sigma=sigma, training=False)
    jax.block_until_ready(out_eval)
    ref_eval = feature_selector_reference(prev_x, mu, sigma=sigma, training=False)
    assert jnp.allclose(out_eval, ref_eval, atol=1e-6), "eval-mode mismatch"

    out_train = feature_selector_forward(prev_x, mu, sigma=sigma, training=True, key=k_noise)
    jax.block_until_ready(out_train)
    ref_train = feature_selector_reference(prev_x, mu, sigma=sigma, training=True, key=k_noise)
    assert jnp.allclose(out_train, ref_train, atol=1e-6), "train-mode mismatch"

    # ---- batch not a multiple of 128/d -> general (ragged, masked-edge) path, small d ----
    prev_x_odd = jax.random.normal(k_x3, (5, input_dim), dtype=jnp.float32)
    out_odd = feature_selector_forward(prev_x_odd, mu, sigma=sigma, training=False)
    jax.block_until_ready(out_odd)
    ref_odd = feature_selector_reference(prev_x_odd, mu, sigma=sigma, training=False)
    assert jnp.allclose(out_odd, ref_odd, atol=1e-6), "small ragged path mismatch"

    # ---- non-aligned shape, no wrapper pad/slice: ragged edge blocks masked by Pallas ----
    batch2, input_dim2 = 260, 200
    mu2 = 0.01 * jax.random.normal(k_mu2, (input_dim2,), dtype=jnp.float32)
    prev_x2 = jax.random.normal(k_x2, (batch2, input_dim2), dtype=jnp.float32)
    out2 = feature_selector_forward(prev_x2, mu2, sigma=sigma, training=False)
    jax.block_until_ready(out2)
    ref2 = feature_selector_reference(prev_x2, mu2, sigma=sigma, training=False)
    assert jnp.allclose(out2, ref2, atol=1e-6), "ragged/tiled path mismatch"

    # ---- mixed dtype: bf16 activations with f32 mu (explicit store cast in kernel) ----
    prev_x_bf16 = prev_x.astype(jnp.bfloat16)
    out_bf16 = feature_selector_forward(prev_x_bf16, mu, sigma=sigma, training=False)
    jax.block_until_ready(out_bf16)
    ref_bf16 = feature_selector_reference(prev_x_bf16, mu, sigma=sigma, training=False)
    assert jnp.allclose(out_bf16.astype(jnp.float32),
                        ref_bf16.astype(jnp.bfloat16).astype(jnp.float32),
                        atol=1e-2), "bf16 mismatch"

    print("KERNEL_OK")
</pallas_src>

<mosaic_0001>
module attributes {stable_mosaic.version = 11 : i64} {
  func.func @_feature_selector_kernel(%arg0: i32, %arg1: i32, %arg2: memref<1x128xf32, #tpu.memory_space<vmem>>, %arg3: memref<8x128xf32, #tpu.memory_space<vmem>>, %arg4: memref<8x128xf32, #tpu.memory_space<vmem>>) attributes {dimension_semantics = [#tpu.dimension_semantics<parallel>, #tpu.dimension_semantics<parallel>], iteration_bounds = array<i64: 1, 1>, scalar_prefetch = 0 : i64, scratch_operands = 0 : i64, tpu.core_type = #tpu.core_type<tc>, window_params = [{transform_indices = @transform_0, window_bounds = array<i64: 1, 128>}, {transform_indices = @transform_1, window_bounds = array<i64: 8, 128>}, {transform_indices = @transform_2, window_bounds = array<i64: 8, 128>}]} {
    %c0 = arith.constant 0 : index
    %c0_0 = arith.constant 0 : index
    %0 = vector.load %arg2[%c0, %c0_0] : memref<1x128xf32, #tpu.memory_space<vmem>>, vector<1x128xf32>
    %cst = arith.constant 5.000000e-01 : f32
    %1 = vector.broadcast %cst : f32 to vector<1x128xf32>
    %2 = arith.addf %0, %1 : vector<1x128xf32>
    %cst_1 = arith.constant 0.000000e+00 : f32
    %cst_2 = arith.constant 1.000000e+00 : f32
    %3 = vector.broadcast %cst_1 : f32 to vector<1x128xf32>
    %4 = arith.maximumf %3, %2 : vector<1x128xf32>
    %5 = vector.broadcast %cst_2 : f32 to vector<1x128xf32>
    %6 = arith.minimumf %5, %4 : vector<1x128xf32>
    %c0_3 = arith.constant 0 : index
    %c0_4 = arith.constant 0 : index
    %7 = vector.load %arg3[%c0_3, %c0_4] : memref<8x128xf32, #tpu.memory_space<vmem>>, vector<8x128xf32>
    %8 = vector.broadcast %6 : vector<1x128xf32> to vector<8x128xf32>
    %9 = arith.mulf %7, %8 : vector<8x128xf32>
    %c0_5 = arith.constant 0 : index
    %c0_6 = arith.constant 0 : index
    %10 = vector.load %arg4[%c0_5, %c0_6] : memref<8x128xf32, #tpu.memory_space<vmem>>, vector<8x128xf32>
    tpu.vector_store %arg4[%c0_5, %c0_6], %9 {strides = array<i32>} : memref<8x128xf32, #tpu.memory_space<vmem>>, vector<8x128xf32>,
    return
  }
  func.func @transform_0(%arg0: i32, %arg1: i32) -> (i32, i32) {
    %c0_i32 = arith.constant 0 : i32
    %c0_i32_0 = arith.constant 0 : i32
    return %c0_i32, %arg0 : i32, i32
  }
  func.func @transform_1(%arg0: i32, %arg1: i32) -> (i32, i32) {
    %c0_i32 = arith.constant 0 : i32
    return %arg1, %arg0 : i32, i32
  }
  func.func @transform_2(%arg0: i32, %arg1: i32) -> (i32, i32) {
    %c0_i32 = arith.constant 0 : i32
    return %arg1, %arg0 : i32, i32
  }
}

</mosaic_0001>

<llo_original>
// kernel: tpu_custom_call.1
$region0: #{tpu_custom_call.1}
  #allocation0 [shape = 'u32[]', space=smem, size = 0x4, offset = 0x4, fixed_abs, tag = 'smem constant byte address 0x4 - core index']
  #allocation1 [shape = 'u32[144,128]{1,0:T(1,128)}', space=vmem, size = 0x12000, scoped, tag = 'internal scratch']
  %s0 = inlined_call_operand.hbm [shape: f32[1,128], index: 0, kind: input, shape index: {}]
  %s1 = inlined_call_operand.vmem [shape: f32[2,128], index: 1, kind: input, shape index: {}]
  %s2 = inlined_call_operand.hbm [shape: f32[2,128], index: 2, kind: output, shape index: {}]
  %s3 = sld [smem:[#allocation0]]
  $region22: #{tpu_custom_call.1} parent=0
    _
  %s5 = ssub.s32 1, %s3
  %s6 = scalar_select 0, %s5, %s3
  $region1: #{tpu_custom_call.1} parent=0
    #allocation2 [shape = 'u8[512]{0}', space=vmem, size = 0x400, scoped, tag = 'input window, operand 0, single buffered']
    #allocation3 [shape = 's32[1]{0}', space=sflag, size = 0x4, scoped, tag = 'scoped memory for tpu_custom_call.1']
    #allocation4 [shape = 's32[1]{0}', space=sflag, size = 0x4, scoped, tag = 'scoped memory for tpu_custom_call.1']
    #allocation5 [shape = 'u8[4096]{0}', space=vmem, size = 0x1000, scoped, tag = 'output window, operand 0, single buffered']
    %7 = vsyncpa [#allocation3], 0
    %8 = vsyncpa [#allocation4], 0
    // Predicated region
    $region2: #{tpu_custom_call.1} parent=1 // pred_check
      _
    $region3: #{tpu_custom_call.1} parent=1 // pred_check_branch
      %10 = sbr.rel (0) target = $region5
    $region4: #{tpu_custom_call.1} parent=1 // pred_region
      %s12 = ssub.s32 16, 16
      %13 = vsyncadd [#allocation3], %s12
      %s15 = sshll.u32 [#allocation2], 4
      %s16 = int_to_ptr.vmem [resolvable:$true] %s15
      %18 = dma.hbm_to_vmem [thread:$0]  %s0, 16, %s16, [#allocation3]
    $region5: #{tpu_custom_call.1} parent=1 // pred_fallthru
      _
    // Predicated region
    $region6: #{tpu_custom_call.1} parent=1 // pred_check
      _
    $region7: #{tpu_custom_call.1} parent=1 // pred_check_branch
      %20 = sbr.rel (0) target = $region9
    $region8: #{tpu_custom_call.1} parent=1 // pred_region
      _
    $region9: #{tpu_custom_call.1} parent=1 // pred_fallthru
      _
    // Predicated region
    $region10: #{tpu_custom_call.1} parent=1 // pred_check
      _
    $region11: #{tpu_custom_call.1} parent=1 // pred_check_branch
      %22 = sbr.rel (0) target = $region13
    $region12: #{tpu_custom_call.1} parent=1 // pred_region
      %23 = dma.done [#allocation3], 16
    $region13: #{tpu_custom_call.1} parent=1 // pred_fallthru
      _
    %v24 = vld [vmem:[#allocation2] sm:$0x1]
    %v25 = vadd.f32 %v24, 0.5
    %v26 = vmax.f32 %v25, 0.0
    %v27 = vmin.f32 %v26, 1.0
    %v28 = vld [vmem:[%s1] sm:$0xff]
    %v30 = vlaneseq
    %v31 = vshrl.u32 %v30, 7
    %v32 = vsub.s32 0, %v31
    %v33 = vrot.slane %v27, %v32
    %v35 = vmul.f32 %v28, %v33
    %36 = vst [vmem:[#allocation5] sm:$0xff] %v35
    // Predicated region
    $region14: #{tpu_custom_call.1} parent=1 // pred_check
      _
    $region15: #{tpu_custom_call.1} parent=1 // pred_check_branch
      %38 = sbr.rel (0) target = $region17
    $region16: #{tpu_custom_call.1} parent=1 // pred_region
      %s40 = ssub.s32 128, 32
      %41 = vsyncadd [#allocation4], %s40
      %s42 = sshll.u32 [#allocation5], 4
      %s43 = int_to_ptr.vmem [resolvable:$true] %s42
      %48 = dma.vmem_to_hbm [thread:$0]  %s43, 32, %s2, [#allocation4], 32, 32, 2
    $region17: #{tpu_custom_call.1} parent=1 // pred_fallthru
      _
    // Predicated region
    $region18: #{tpu_custom_call.1} parent=1 // pred_check
      _
    $region19: #{tpu_custom_call.1} parent=1 // pred_check_branch
      %50 = sbr.rel (0) target = $region21
    $region20: #{tpu_custom_call.1} parent=1 // pred_region
      %51 = dma.done [#allocation4], 128
    $region21: #{tpu_custom_call.1} parent=1 // pred_fallthru
      _
    %52 = vsyncpa [#allocation3], 1
    %53 = vsyncpa [#allocation4], 1

</llo_original>
